<compile_context>
chip_gen: v6e
topology: v6e:2x2x1
jax: 0.10.0
libtpu: 0.0.40
codegen_flags: <defaults>
</compile_context>

<pallas_src>
import functools

import jax
import jax.numpy as jnp
import numpy as np
from jax.experimental import pallas as pl
from jax.experimental.pallas import tpu as pltpu


def _decoder_kernel(tr_ref, re_ref, w1a_ref, w1b_ref, b1_ref, w2_ref, b2_ref,
                    o_ref):
    # First Linear (on the concatenated input), done as two MXU matmuls with
    # f32 accumulation.
    h = (jnp.dot(tr_ref[...], w1a_ref[...], preferred_element_type=jnp.float32)
         + jnp.dot(re_ref[...], w1b_ref[...], preferred_element_type=jnp.float32)
         + b1_ref[...].astype(jnp.float32))
    # SiLU activation (x * sigmoid(x)) in f32 -- VPU + EUP.
    h = h * jax.nn.sigmoid(h)
    # Second Linear (output projection).  Feed the MXU in the weight dtype
    # (bf16 when weights are bf16); accumulate in f32.
    h_lo = h.astype(w2_ref.dtype)
    out = (jnp.dot(h_lo, w2_ref[...], preferred_element_type=jnp.float32)
           + b2_ref[...].astype(jnp.float32))
    o_ref[...] = out.astype(o_ref.dtype)


def _round_up(x, m):
    return (x + m - 1) // m * m


def _block_diag(w, p):
    """(k, n) -> (p*k, p*n) block-diagonal matrix with p copies of w."""
    if p == 1:
        return w
    k, n = w.shape
    eye = jnp.eye(p, dtype=w.dtype)
    return (eye[:, None, :, None] * w[None, :, None, :]).reshape(p * k, p * n)


def _choose_block_rows(rows, requested_rows):
    """Physical (packed) rows per grid step: multiple of 8 (or == rows)."""
    bm = max(8, (requested_rows // 8) * 8)
    bm = min(bm, _round_up(rows, 8))
    if bm >= rows:
        bm = rows                       # single block covering the full dim
    if rows > 8 and pl.cdiv(rows, bm) < 2:
        # Keep >= 2 grid steps so the "parallel" axis can shard across the two
        # TensorCores on v7x.
        bm = _round_up(pl.cdiv(rows, 2), 8)
    return bm


@functools.partial(jax.jit, static_argnames=("block_m",))
def causal_decoder_forward(tr_code, re_code, params, block_m=1024):
    """tr_code, re_code: (..., code_dim).  Returns (..., hidden_state_dim).

    block_m = requested logical rows per grid step (sweep 256/512/1024/2048).
    """
    w1, b1, w2, b2 = params["w1"], params["b1"], params["w2"], params["b2"]
    code_dim = tr_code.shape[-1]
    hidden2 = w1.shape[1]               # hidden_state_dim * 2
    hidden = w2.shape[1]                # hidden_state_dim

    lead_shape = tr_code.shape[:-1]
    M = int(np.prod(lead_shape)) if lead_shape else 1

    # Row packing factor: fold P logical rows per physical row so the output
    # lane width is a multiple of 128 (unmasked stores).  Pure layout change.
    if hidden < 128 and 128 % hidden == 0 and M % (128 // hidden) == 0:
        p = 128 // hidden
    else:
        p = 1

    rows = M // p
    in_w = p * code_dim
    mid_w = p * hidden2
    out_w = p * hidden

    # Contiguous reshapes -> free (bitcast) on the XLA side.
    tr_p = tr_code.reshape(rows, in_w)
    re_p = re_code.reshape(rows, in_w)

    # Split W1 (concat -> split matmul), then block-diagonalize for packing.
    w1a = _block_diag(w1[:code_dim, :], p)
    w1b = _block_diag(w1[code_dim:, :], p)
    w2_p = _block_diag(w2, p)
    b1_p = jnp.tile(b1, p).reshape(1, mid_w)
    b2_p = jnp.tile(b2, p).reshape(1, out_w)

    bm = _choose_block_rows(rows, max(block_m // p, 8))
    grid = (pl.cdiv(rows, bm),)

    # VMEM budget: double-buffered activation tiles + (double-buffered) weights
    # + f32 intermediates, with 2x headroom; keep well under v7x's 64 MiB.
    in_item = jnp.dtype(tr_code.dtype).itemsize
    w_item = jnp.dtype(w1.dtype).itemsize
    act_bytes = 2 * bm * (2 * in_w * in_item + out_w * in_item)
    wgt_bytes = 2 * (2 * in_w * mid_w + mid_w * out_w + mid_w + out_w) * w_item
    tmp_bytes = 4 * bm * mid_w * 4
    vmem_limit = min(max(2 * (act_bytes + wgt_bytes + tmp_bytes),
                         32 * 1024 * 1024), 48 * 1024 * 1024)

    out = pl.pallas_call(
        _decoder_kernel,
        out_shape=jax.ShapeDtypeStruct((rows, out_w), tr_code.dtype),
        grid_spec=pltpu.PrefetchScalarGridSpec(
            num_scalar_prefetch=0,
            grid=grid,
            in_specs=[
                pl.BlockSpec((bm, in_w), lambda i: (i, 0)),      # tr rows
                pl.BlockSpec((bm, in_w), lambda i: (i, 0)),      # re rows
                pl.BlockSpec((in_w, mid_w), lambda i: (0, 0)),   # W1 (top half)
                pl.BlockSpec((in_w, mid_w), lambda i: (0, 0)),   # W1 (bottom half)
                pl.BlockSpec((1, mid_w), lambda i: (0, 0)),      # b1
                pl.BlockSpec((mid_w, out_w), lambda i: (0, 0)),  # W2
                pl.BlockSpec((1, out_w), lambda i: (0, 0)),      # b2
            ],
            out_specs=pl.BlockSpec((bm, out_w), lambda i: (i, 0)),
        ),
        compiler_params=pltpu.CompilerParams(
            dimension_semantics=("parallel",),
            vmem_limit_bytes=vmem_limit),
    )(tr_p, re_p, w1a, w1b, b1_p, w2_p, b2_p)

    # Contiguous reshape back to the logical shape (free).
    return out.reshape(*lead_shape, hidden)


def init_params(key, code_dim, hidden_state_dim, dtype=jnp.float32):
    """MLP(input_dim=2*code_dim, out=hidden_state_dim, hidden=[2*hidden])."""
    input_dim = 2 * code_dim
    hidden2 = 2 * hidden_state_dim
    k1, k2, k3, k4 = jax.random.split(key, 4)
    lim1 = 1.0 / np.sqrt(input_dim)
    lim2 = 1.0 / np.sqrt(hidden2)
    return {
        "w1": jax.random.uniform(k1, (input_dim, hidden2), dtype, -lim1, lim1),
        "b1": jax.random.uniform(k2, (hidden2,), dtype, -lim1, lim1),
        "w2": jax.random.uniform(k3, (hidden2, hidden_state_dim), dtype, -lim2, lim2),
        "b2": jax.random.uniform(k4, (hidden_state_dim,), dtype, -lim2, lim2),
    }


def _reference_forward(tr_code, re_code, params):
    x = jnp.concatenate([tr_code, re_code], axis=-1)
    h = x @ params["w1"] + params["b1"]
    h = h * jax.nn.sigmoid(h)       # SiLU
    return h @ params["w2"] + params["b2"]


if __name__ == "__main__":
    code_dim, hidden_state_dim = 16, 32
    key = jax.random.PRNGKey(0)
    k_tr, k_re, k_p, k_tr2, k_re2 = jax.random.split(key, 5)

    # --- Test 1: f32, packed (lane-dense) path --------------------------------
    batch, seq = 2, 8
    tr_code = jax.random.normal(k_tr, (batch, seq, code_dim), jnp.float32)
    re_code = jax.random.normal(k_re, (batch, seq, code_dim), jnp.float32)
    params = init_params(k_p, code_dim, hidden_state_dim, jnp.float32)

    out = jax.block_until_ready(causal_decoder_forward(tr_code, re_code, params))
    ref = _reference_forward(tr_code, re_code, params)
    np.testing.assert_allclose(np.asarray(out), np.asarray(ref),
                               rtol=2e-5, atol=2e-5)
    assert out.shape == (batch, seq, hidden_state_dim)

    # --- Test 2: f32, non-divisible M (exercises tail-block masking) ----------
    b2_, s2_ = 3, 7
    tr_nd = jax.random.normal(k_tr2, (b2_, s2_, code_dim), jnp.float32)
    re_nd = jax.random.normal(k_re2, (b2_, s2_, code_dim), jnp.float32)
    out_nd = jax.block_until_ready(causal_decoder_forward(tr_nd, re_nd, params))
    ref_nd = _reference_forward(tr_nd, re_nd, params)
    np.testing.assert_allclose(np.asarray(out_nd), np.asarray(ref_nd),
                               rtol=2e-5, atol=2e-5)
    assert out_nd.shape == (b2_, s2_, hidden_state_dim)

    # --- Test 3: bf16 I/O (halves HBM traffic), f32 accumulation --------------
    tr_bf = tr_code.astype(jnp.bfloat16)
    re_bf = re_code.astype(jnp.bfloat16)
    params_bf = jax.tree_util.tree_map(lambda a: a.astype(jnp.bfloat16), params)
    out_bf = jax.block_until_ready(
        causal_decoder_forward(tr_bf, re_bf, params_bf))
    ref_f32 = _reference_forward(tr_code, re_code, params)
    np.testing.assert_allclose(np.asarray(out_bf, dtype=np.float32),
                               np.asarray(ref_f32), rtol=5e-2, atol=5e-2)
    assert out_bf.dtype == jnp.bfloat16
    assert out_bf.shape == (batch, seq, hidden_state_dim)

    print("KERNEL_OK")
</pallas_src>

<mosaic_0001>
module attributes {stable_mosaic.version = 11 : i64} {
  func.func @_decoder_kernel(%arg0: i32, %arg1: memref<4x64xf32, #tpu.memory_space<vmem>>, %arg2: memref<4x64xf32, #tpu.memory_space<vmem>>, %arg3: memref<64x256xf32, #tpu.memory_space<vmem>>, %arg4: memref<64x256xf32, #tpu.memory_space<vmem>>, %arg5: memref<1x256xf32, #tpu.memory_space<vmem>>, %arg6: memref<256x128xf32, #tpu.memory_space<vmem>>, %arg7: memref<1x128xf32, #tpu.memory_space<vmem>>, %arg8: memref<4x128xf32, #tpu.memory_space<vmem>>) attributes {dimension_semantics = [#tpu.dimension_semantics<parallel>], iteration_bounds = array<i64: 1>, scalar_prefetch = 0 : i64, scratch_operands = 0 : i64, tpu.core_type = #tpu.core_type<tc>, window_params = [{transform_indices = @transform_0, window_bounds = array<i64: 4, 64>}, {transform_indices = @transform_1, window_bounds = array<i64: 4, 64>}, {pipeline_mode = #tpu.pipeline_mode<synchronous>, transform_indices = @transform_2, window_bounds = array<i64: 64, 256>}, {pipeline_mode = #tpu.pipeline_mode<synchronous>, transform_indices = @transform_3, window_bounds = array<i64: 64, 256>}, {pipeline_mode = #tpu.pipeline_mode<synchronous>, transform_indices = @transform_4, window_bounds = array<i64: 1, 256>}, {pipeline_mode = #tpu.pipeline_mode<synchronous>, transform_indices = @transform_5, window_bounds = array<i64: 256, 128>}, {pipeline_mode = #tpu.pipeline_mode<synchronous>, transform_indices = @transform_6, window_bounds = array<i64: 1, 128>}, {transform_indices = @transform_7, window_bounds = array<i64: 4, 128>}]} {
    %c0 = arith.constant 0 : index
    %c0_0 = arith.constant 0 : index
    %0 = vector.load %arg1[%c0, %c0_0] : memref<4x64xf32, #tpu.memory_space<vmem>>, vector<4x64xf32>
    %c0_1 = arith.constant 0 : index
    %c0_2 = arith.constant 0 : index
    %1 = vector.load %arg3[%c0_1, %c0_2] : memref<64x256xf32, #tpu.memory_space<vmem>>, vector<64x256xf32>
    %cst = arith.constant dense<0.000000e+00> : vector<4x256xf32>
    %2 = tpu.matmul %0, %1, %cst {dimension_numbers = #tpu.dot_dimension_numbers<[1], [0], [0], [1], [0, 0, 1, 1], [], []>} : vector<4x64xf32>, vector<64x256xf32>, vector<4x256xf32> -> vector<4x256xf32>
    %c0_3 = arith.constant 0 : index
    %c0_4 = arith.constant 0 : index
    %3 = vector.load %arg2[%c0_3, %c0_4] : memref<4x64xf32, #tpu.memory_space<vmem>>, vector<4x64xf32>
    %c0_5 = arith.constant 0 : index
    %c0_6 = arith.constant 0 : index
    %4 = vector.load %arg4[%c0_5, %c0_6] : memref<64x256xf32, #tpu.memory_space<vmem>>, vector<64x256xf32>
    %cst_7 = arith.constant dense<0.000000e+00> : vector<4x256xf32>
    %5 = tpu.matmul %3, %4, %cst_7 {dimension_numbers = #tpu.dot_dimension_numbers<[1], [0], [0], [1], [0, 0, 1, 1], [], []>} : vector<4x64xf32>, vector<64x256xf32>, vector<4x256xf32> -> vector<4x256xf32>
    %6 = arith.addf %2, %5 : vector<4x256xf32>
    %c0_8 = arith.constant 0 : index
    %c0_9 = arith.constant 0 : index
    %7 = vector.load %arg5[%c0_8, %c0_9] : memref<1x256xf32, #tpu.memory_space<vmem>>, vector<1x256xf32>
    %8 = vector.broadcast %7 : vector<1x256xf32> to vector<4x256xf32>
    %9 = arith.addf %6, %8 : vector<4x256xf32>
    %10 = arith.negf %9 : vector<4x256xf32>
    %11 = math.exp %10 : vector<4x256xf32>
    %cst_10 = arith.constant 1.000000e+00 : f32
    %12 = vector.broadcast %cst_10 : f32 to vector<4x256xf32>
    %13 = arith.addf %12, %11 : vector<4x256xf32>
    %14 = arith.divf %12, %13 : vector<4x256xf32>
    %15 = arith.mulf %9, %14 : vector<4x256xf32>
    %c0_11 = arith.constant 0 : index
    %c0_12 = arith.constant 0 : index
    %16 = vector.load %arg6[%c0_11, %c0_12] : memref<256x128xf32, #tpu.memory_space<vmem>>, vector<256x128xf32>
    %cst_13 = arith.constant dense<0.000000e+00> : vector<4x128xf32>
    %17 = tpu.matmul %15, %16, %cst_13 {dimension_numbers = #tpu.dot_dimension_numbers<[1], [0], [0], [1], [0, 0, 1, 1], [], []>} : vector<4x256xf32>, vector<256x128xf32>, vector<4x128xf32> -> vector<4x128xf32>
    %c0_14 = arith.constant 0 : index
    %c0_15 = arith.constant 0 : index
    %18 = vector.load %arg7[%c0_14, %c0_15] : memref<1x128xf32, #tpu.memory_space<vmem>>, vector<1x128xf32>
    %19 = vector.broadcast %18 : vector<1x128xf32> to vector<4x128xf32>
    %20 = arith.addf %17, %19 : vector<4x128xf32>
    %c0_16 = arith.constant 0 : index
    %c0_17 = arith.constant 0 : index
    %21 = vector.load %arg8[%c0_16, %c0_17] : memref<4x128xf32, #tpu.memory_space<vmem>>, vector<4x128xf32>
    tpu.vector_store %arg8[%c0_16, %c0_17], %20 {strides = array<i32>} : memref<4x128xf32, #tpu.memory_space<vmem>>, vector<4x128xf32>,
    return
  }
  func.func @transform_0(%arg0: i32) -> (i32, i32) {
    %c0_i32 = arith.constant 0 : i32
    %c0_i32_0 = arith.constant 0 : i32
    return %arg0, %c0_i32 : i32, i32
  }
  func.func @transform_1(%arg0: i32) -> (i32, i32) {
    %c0_i32 = arith.constant 0 : i32
    %c0_i32_0 = arith.constant 0 : i32
    return %arg0, %c0_i32 : i32, i32
  }
  func.func @transform_2(%arg0: i32) -> (i32, i32) {
    %c0_i32 = arith.constant 0 : i32
    %c0_i32_0 = arith.constant 0 : i32
    %c0_i32_1 = arith.constant 0 : i32
    return %c0_i32, %c0_i32_0 : i32, i32
  }
  func.func @transform_3(%arg0: i32) -> (i32, i32) {
    %c0_i32 = arith.constant 0 : i32
    %c0_i32_0 = arith.constant 0 : i32
    %c0_i32_1 = arith.constant 0 : i32
    return %c0_i32, %c0_i32_0 : i32, i32
  }
  func.func @transform_4(%arg0: i32) -> (i32, i32) {
    %c0_i32 = arith.constant 0 : i32
    %c0_i32_0 = arith.constant 0 : i32
    %c0_i32_1 = arith.constant 0 : i32
    return %c0_i32, %c0_i32_0 : i32, i32
  }
  func.func @transform_5(%arg0: i32) -> (i32, i32) {
    %c0_i32 = arith.constant 0 : i32
    %c0_i32_0 = arith.constant 0 : i32
    %c0_i32_1 = arith.constant 0 : i32
    return %c0_i32, %c0_i32_0 : i32, i32
  }
  func.func @transform_6(%arg0: i32) -> (i32, i32) {
    %c0_i32 = arith.constant 0 : i32
    %c0_i32_0 = arith.constant 0 : i32
    %c0_i32_1 = arith.constant 0 : i32
    return %c0_i32, %c0_i32_0 : i32, i32
  }
  func.func @transform_7(%arg0: i32) -> (i32, i32) {
    %c0_i32 = arith.constant 0 : i32
    %c0_i32_0 = arith.constant 0 : i32
    return %arg0, %c0_i32 : i32, i32
  }
}

</mosaic_0001>

<llo_original>
// kernel: tile.13
$region0: #{tile.13}
  #allocation0 [shape = 's32[1]{0}', space=sflag, size = 0x4, scoped, tag = 'scoped memory for tile.13']
  %s0 = inlined_call_operand.vmem [shape: f32[64], index: 0, kind: input, shape index: {}]
  %s1 = inlined_call_operand.vmem [shape: f32[4,64], index: 1, kind: output, shape index: {}]
  // Predicated region
  $region2: #{tile.13} parent=0 // pred_check
    _
  $region3: #{tile.13} parent=0 // pred_check_branch
    %3 = sbr.rel (0) target = $region5
  $region4: #{tile.13} parent=0 // pred_region
    _
  $region5: #{tile.13} parent=0 // pred_fallthru
    _
  %v4 = vld [vmem:[%s0] ss:$0 sm:$0xff]
  %5 = vst [vmem:[%s1] sm:$0xf] %v4

// kernel: tile.14
$region0: #{tile.14}
  %s0 = inlined_call_operand.vmem [shape: f32[4,64], index: 0, kind: input, shape index: {}]
  %s1 = inlined_call_operand.vmem [shape: f32[1,256], index: 1, kind: output, shape index: {}]
  $region1: #{tile.14} parent=0
    #allocation0 [shape = 'u8[8192]{0}', space=vmem, size = 0x2000, scoped, tag = 'scoped mem for output reshape']
    #allocation1 [shape = 'u8[4096]{0}', space=vmem, size = 0x1000, scoped, tag = 'scoped mem for input reshape']
    %s3 = sshll.u32 1, 4
    %s4 = ssub.s32 %s3, 1
    %v5 = vld [vmem:[%s0] sm:%s4]
    %6 = vst [vmem:[#allocation1] sm:%s4] %v5
    %s7 = smov 3
    %v8 = vld [vmem:[#allocation1] ss:$2 sm:%s7]
    %vm9 = vcmask 523264
    %10 = vst.msk [vmem:[#allocation0] ss:$8 sm:$0x3] %vm9, %v8
    %s11 = scalar_lea.vmem [#allocation1], 1
    %s12 = smov 3
    %v13 = vld [vmem:[%s11] ss:$2 sm:%s12]
    %14 = vrot.lane.b32.xlu0 %v13, 64
    %v15 = vpop.permute.xlu0 %14
    %vm16 = vcmask 1048064
    %17 = vst.msk [vmem:[#allocation0] ss:$8 sm:$0x3] %vm16, %v15
    %s19 = sshll.u32 1, 1
    %s20 = ssub.s32 %s19, 1
    %v22 = vld [vmem:[#allocation0] sm:%s20]
    %s23 = sshll.u32 1, 1
    %s24 = ssub.s32 %s23, 1
    %25 = vst [vmem:[%s1] sm:%s24] %v22
    %s26 = scalar_lea.vmem [#allocation0], 8
    %v27 = vld [vmem:[%s26] sm:%s20]
    %s28 = sshll.u32 1, 1
    %s29 = ssub.s32 %s28, 1
    %s30 = scalar_lea.vmem %s1, 1
    %31 = vst [vmem:[%s30] sm:%s29] %v27

// kernel: tile.18
$region0: #{tile.18}
  #allocation0 [shape = 's32[1]{0}', space=sflag, size = 0x4, scoped, tag = 'scoped memory for tile.18']
  %s0 = inlined_call_operand.vmem [shape: f32[32], index: 0, kind: input, shape index: {}]
  %s1 = inlined_call_operand.vmem [shape: f32[4,32], index: 1, kind: output, shape index: {}]
  // Predicated region
  $region2: #{tile.18} parent=0 // pred_check
    _
  $region3: #{tile.18} parent=0 // pred_check_branch
    %3 = sbr.rel (0) target = $region5
  $region4: #{tile.18} parent=0 // pred_region
    _
  $region5: #{tile.18} parent=0 // pred_fallthru
    _
  %v4 = vld [vmem:[%s0] ss:$0 sm:$0xff]
  %5 = vst [vmem:[%s1] sm:$0xf] %v4

// kernel: tile.19
$region0: #{tile.19}
  %s0 = inlined_call_operand.vmem [shape: f32[4,32], index: 0, kind: input, shape index: {}]
  %s1 = inlined_call_operand.vmem [shape: f32[1,128], index: 1, kind: output, shape index: {}]
  $region1: #{tile.19} parent=0
    #allocation0 [shape = 'u8[4096]{0}', space=vmem, size = 0x1000, scoped, tag = 'scoped mem for output reshape']
    #allocation1 [shape = 'u8[4096]{0}', space=vmem, size = 0x1000, scoped, tag = 'scoped mem for input reshape']
    %s3 = sshll.u32 1, 4
    %s4 = ssub.s32 %s3, 1
    %v5 = vld [vmem:[%s0] sm:%s4]
    %6 = vst [vmem:[#allocation1] sm:%s4] %v5
    %v7 = vld [vmem:[#allocation1] sm:$0x1]
    %vm8 = vcmask 261120
    %9 = vst.msk [vmem:[#allocation0] sm:$0x1] %vm8, %v7
    %s10 = scalar_lea.vmem [#allocation1], 3
    %v11 = vld [vmem:[%s10] sm:$0x1]
    %12 = vrot.lane.b32.xlu0 %v11, 96
    %v13 = vpop.permute.xlu0 %12
    %vm14 = vcmask 1048320
    %15 = vst.msk [vmem:[#allocation0] sm:$0x1] %vm14, %v13
    %s16 = scalar_lea.vmem [#allocation1], 2
    %v17 = vld [vmem:[%s16] sm:$0x1]
    %18 = vrot.lane.b32.xlu0 %v17, 64
    %v19 = vpop.permute.xlu0 %18
    %vm20 = vcmask 785920
    %21 = vst.msk [vmem:[#allocation0] sm:$0x1] %vm20, %v19
    %s22 = scalar_lea.vmem [#allocation1], 1
    %v23 = vld [vmem:[%s22] sm:$0x1]
    %24 = vrot.lane.b32.xlu0 %v23, 32
    %v25 = vpop.permute.xlu0 %24
    %vm26 = vcmask 523520
    %27 = vst.msk [vmem:[#allocation0] sm:$0x1] %vm26, %v25
    %s29 = sshll.u32 1, 1
    %s30 = ssub.s32 %s29, 1
    %v32 = vld [vmem:[#allocation0] sm:%s30]
    %s33 = sshll.u32 1, 1
    %s34 = ssub.s32 %s33, 1
    %35 = vst [vmem:[%s1] sm:%s34] %v32

// kernel: causal_decoder_forward.1
$region0: #{causal_decoder_forward.1}
  #allocation0 [shape = 'u32[]', space=smem, size = 0x4, offset = 0x4, fixed_abs, tag = 'smem constant byte address 0x4 - core index']
  #allocation1 [shape = 'u32[144,128]{1,0:T(1,128)}', space=vmem, size = 0x12000, scoped, tag = 'internal scratch']
  %s0 = inlined_call_operand.vmem [shape: f32[4,64], index: 0, kind: input, shape index: {}]
  %s1 = inlined_call_operand.vmem [shape: f32[4,64], index: 1, kind: input, shape index: {}]
  %s2 = inlined_call_operand.vmem [shape: f32[64,256], index: 2, kind: input, shape index: {}]
  %s3 = inlined_call_operand.vmem [shape: f32[64,256], index: 3, kind: input, shape index: {}]
  %s4 = inlined_call_operand.vmem [shape: f32[1,256], index: 4, kind: input, shape index: {}]
  %s5 = inlined_call_operand.vmem [shape: f32[256,128], index: 5, kind: input, shape index: {}]
  %s6 = inlined_call_operand.vmem [shape: f32[1,128], index: 6, kind: input, shape index: {}]
  %s7 = inlined_call_operand.vmem [shape: f32[4,128], index: 7, kind: output, shape index: {}]
  %s8 = sld [smem:[#allocation0]]
  $region38: #{causal_decoder_forward.1} parent=0
    _
  %s10 = ssub.s32 1, %s8
  %s11 = scalar_select 0, %s10, %s8
  // Predicated region
  $region2: #{causal_decoder_forward.1} parent=0 // pred_check
    _
  $region3: #{causal_decoder_forward.1} parent=0 // pred_check_branch
    %13 = sbr.rel (0) target = $region5
  $region4: #{causal_decoder_forward.1} parent=0 // pred_region
    _
  $region5: #{causal_decoder_forward.1} parent=0 // pred_fallthru
    _
  // Predicated region
  $region6: #{causal_decoder_forward.1} parent=0 // pred_check
    _
  $region7: #{causal_decoder_forward.1} parent=0 // pred_check_branch
    %15 = sbr.rel (0) target = $region9
  $region8: #{causal_decoder_forward.1} parent=0 // pred_region
    _
  $region9: #{causal_decoder_forward.1} parent=0 // pred_fallthru
    _
  // Predicated region
  $region10: #{causal_decoder_forward.1} parent=0 // pred_check
    _
  $region11: #{causal_decoder_forward.1} parent=0 // pred_check_branch
    %17 = sbr.rel (0) target = $region13
  $region12: #{causal_decoder_forward.1} parent=0 // pred_region
    _
  $region13: #{causal_decoder_forward.1} parent=0 // pred_fallthru
    _
  // Predicated region
  $region14: #{causal_decoder_forward.1} parent=0 // pred_check
    _
  $region15: #{causal_decoder_forward.1} parent=0 // pred_check_branch
    %19 = sbr.rel (0) target = $region17
  $region16: #{causal_decoder_forward.1} parent=0 // pred_region
    _
  $region17: #{causal_decoder_forward.1} parent=0 // pred_fallthru
    _
  // Predicated region
  $region18: #{causal_decoder_forward.1} parent=0 // pred_check
    _
  $region19: #{causal_decoder_forward.1} parent=0 // pred_check_branch
    %21 = sbr.rel (0) target = $region21
  $region20: #{causal_decoder_forward.1} parent=0 // pred_region
    _
  $region21: #{causal_decoder_forward.1} parent=0 // pred_fallthru
    _
  // Predicated region
  $region22: #{causal_decoder_forward.1} parent=0 // pred_check
    _
  $region23: #{causal_decoder_forward.1} parent=0 // pred_check_branch
    %23 = sbr.rel (0) target = $region25
  $region24: #{causal_decoder_forward.1} parent=0 // pred_region
    _
  $region25: #{causal_decoder_forward.1} parent=0 // pred_fallthru
    _
  // Predicated region
  $region26: #{causal_decoder_forward.1} parent=0 // pred_check
    _
  $region27: #{causal_decoder_forward.1} parent=0 // pred_check_branch
    %25 = sbr.rel (0) target = $region29
  $region28: #{causal_decoder_forward.1} parent=0 // pred_region
    _
  $region29: #{causal_decoder_forward.1} parent=0 // pred_fallthru
    _
  %v26 = vld [vmem:[%s0] sm:$0xf]
  %v27 = vld [vmem:[%s2] sm:$0xff]
  %v28 = vld [vmem:[%s2 + $0x8] sm:$0xff]
  %v29 = vld [vmem:[%s2 + $0x10] sm:$0xff]
  %v30 = vld [vmem:[%s2 + $0x18] sm:$0xff]
  %v31 = vld [vmem:[%s2 + $0x20] sm:$0xff]
  %v32 = vld [vmem:[%s2 + $0x28] sm:$0xff]
  %v33 = vld [vmem:[%s2 + $0x30] sm:$0xff]
  %v34 = vld [vmem:[%s2 + $0x38] sm:$0xff]
  %v35 = vld [vmem:[%s2 + $0x40] sm:$0xff]
  %v36 = vld [vmem:[%s2 + $0x48] sm:$0xff]
  %v37 = vld [vmem:[%s2 + $0x50] sm:$0xff]
  %v38 = vld [vmem:[%s2 + $0x58] sm:$0xff]
  %v39 = vld [vmem:[%s2 + $0x60] sm:$0xff]
  %v40 = vld [vmem:[%s2 + $0x68] sm:$0xff]
  %v41 = vld [vmem:[%s2 + $0x70] sm:$0xff]
  %v42 = vld [vmem:[%s2 + $0x78] sm:$0xff]
  %v43 = vld [vmem:[%s1] sm:$0xf]
  %v44 = vld [vmem:[%s3] sm:$0xff]
  %v45 = vld [vmem:[%s3 + $0x8] sm:$0xff]
  %v46 = vld [vmem:[%s3 + $0x10] sm:$0xff]
  %v47 = vld [vmem:[%s3 + $0x18] sm:$0xff]
  %v48 = vld [vmem:[%s3 + $0x20] sm:$0xff]
  %v49 = vld [vmem:[%s3 + $0x28] sm:$0xff]
  %v50 = vld [vmem:[%s3 + $0x30] sm:$0xff]
  %v51 = vld [vmem:[%s3 + $0x38] sm:$0xff]
  %v52 = vld [vmem:[%s3 + $0x40] sm:$0xff]
  %v53 = vld [vmem:[%s3 + $0x48] sm:$0xff]
  %v54 = vld [vmem:[%s3 + $0x50] sm:$0xff]
  %v55 = vld [vmem:[%s3 + $0x58] sm:$0xff]
  %v56 = vld [vmem:[%s3 + $0x60] sm:$0xff]
  %v57 = vld [vmem:[%s3 + $0x68] sm:$0xff]
  %v58 = vld [vmem:[%s3 + $0x70] sm:$0xff]
  %v59 = vld [vmem:[%s3 + $0x78] sm:$0xff]
  %vm60 = vcmask 523264
  %v62 = vsel %vm60, %v43, 0
  %64 = vmatprep.subr.mxu0 0.0
  %65 = vmatpush1.msra.mxu0 0.0
  %66 = vmatprep.subr.mxu0 0.0
  %67 = vmatpush1.msra.mxu0 0.0
  %68 = vmatprep.subr.mxu0 0.0
  %69 = vmatpush1.msra.mxu0 0.0
  %70 = vmatprep.subr.mxu0 0.0
  %71 = vmatpush1.msra.mxu0 0.0
  %72 = vmatprep.subr.mxu0 0.0
  %73 = vmatpush1.msra.mxu0 0.0
  %74 = vmatprep.subr.mxu0 0.0
  %75 = vmatpush1.msra.mxu0 0.0
  %76 = vmatprep.subr.mxu0 0.0
  %77 = vmatpush1.msra.mxu0 0.0
  %78 = vmatprep.subr.mxu0 0.0
  %79 = vmatpush1.msra.mxu0 0.0
  %80 = vmatprep.subr.mxu0 %v59
  %81 = vmatpush1.msra.mxu0 %v58
  %82 = vmatprep.subr.mxu0 %v57
  %83 = vmatpush1.msra.mxu0 %v56
  %84 = vmatprep.subr.mxu0 %v55
  %85 = vmatpush1.msra.mxu0 %v54
  %86 = vmatprep.subr.mxu0 %v53
  %87 = vmatpush1.msra.mxu0 %v52
  %88 = vmatprep.subr.mxu0 %v51
  %89 = vmatpush1.msra.mxu0 %v50
  %90 = vmatprep.subr.mxu0 %v49
  %91 = vmatpush1.msra.mxu0 %v48
  %92 = vmatprep.subr.mxu0 %v47
  %93 = vmatpush1.msra.mxu0 %v46
  %94 = vmatprep.subr.mxu0 %v45
  %95 = vmatpush1.msra.mxu0 %v44
  %96 = vmatprep.subr.mxu0 0.0
  %97 = vmatpush2.msra.mxu0 0.0
  %98 = vmatprep.subr.mxu0 0.0
  %99 = vmatpush2.msra.mxu0 0.0
  %100 = vmatprep.subr.mxu0 0.0
  %101 = vmatpush2.msra.mxu0 0.0
  %102 = vmatprep.subr.mxu0 0.0
  %103 = vmatpush2.msra.mxu0 0.0
  %104 = vmatprep.subr.mxu0 0.0
  %105 = vmatpush2.msra.mxu0 0.0
  %106 = vmatprep.subr.mxu0 0.0
  %107 = vmatpush2.msra.mxu0 0.0
  %108 = vmatprep.subr.mxu0 0.0
  %109 = vmatpush2.msra.mxu0 0.0
  %110 = vmatprep.subr.mxu0 0.0
  %111 = vmatpush2.msra.mxu0 0.0
  %112 = vmatprep.subr.mxu0 0.0
  %113 = vmatpush2.msra.mxu0 0.0
  %114 = vmatprep.subr.mxu0 0.0
  %115 = vmatpush2.msra.mxu0 0.0
  %116 = vmatprep.subr.mxu0 0.0
  %117 = vmatpush2.msra.mxu0 0.0
  %118 = vmatprep.subr.mxu0 0.0
  %119 = vmatpush2.msra.mxu0 0.0
  %120 = vmatprep.subr.mxu0 0.0
  %121 = vmatpush2.msra.mxu0 0.0
  %122 = vmatprep.subr.mxu0 0.0
  %123 = vmatpush2.msra.mxu0 0.0
  %124 = vmatprep.subr.mxu0 0.0
  %125 = vmatpush2.msra.mxu0 0.0
  %126 = vmatprep.subr.mxu0 0.0
  %127 = vmatpush2.msra.mxu0 0.0
  %128 = vmatprep.mubr.f32.mxu0 0.0
  %129 = vmatmul.mubr.f32.gmra.mxu0 %v62
  %v130 = vpop.f32.mrf.mxu0
  %v131 = vadd.f32 0.0, %v130
  %v132 = vpop.f32.mrf.mxu0
  %v133 = vadd.f32 0.0, %v132
  %134 = vdwg.mxu0
  %v136 = vsel %vm60, %v26, 0
  %138 = vmatprep.subr.mxu0 0.0
  %139 = vmatpush1.msra.mxu0 0.0
  %140 = vmatprep.subr.mxu0 0.0
  %141 = vmatpush1.msra.mxu0 0.0
  %142 = vmatprep.subr.mxu0 0.0
  %143 = vmatpush1.msra.mxu0 0.0
  %144 = vmatprep.subr.mxu0 0.0
  %145 = vmatpush1.msra.mxu0 0.0
  %146 = vmatprep.subr.mxu0 0.0
  %147 = vmatpush1.msra.mxu0 0.0
  %148 = vmatprep.subr.mxu0 0.0
  %149 = vmatpush1.msra.mxu0 0.0
  %150 = vmatprep.subr.mxu0 0.0
  %151 = vmatpush1.msra.mxu0 0.0
  %152 = vmatprep.subr.mxu0 0.0
  %153 = vmatpush1.msra.mxu0 0.0
  %154 = vmatprep.subr.mxu0 %v42
  %155 = vmatpush1.msra.mxu0 %v41
  %156 = vmatprep.subr.mxu0 %v40
  %157 = vmatpush1.msra.mxu0 %v39
  %158 = vmatprep.subr.mxu0 %v38
  %159 = vmatpush1.msra.mxu0 %v37
  %160 = vmatprep.subr.mxu0 %v36
  %161 = vmatpush1.msra.mxu0 %v35
  %162 = vmatprep.subr.mxu0 %v34
  %163 = vmatpush1.msra.mxu0 %v33
  %164 = vmatprep.subr.mxu0 %v32
  %165 = vmatpush1.msra.mxu0 %v31
  %166 = vmatprep.subr.mxu0 %v30
  %167 = vmatpush1.msra.mxu0 %v29
  %168 = vmatprep.subr.mxu0 %v28
  %169 = vmatpush1.msra.mxu0 %v27
  %170 = vmatprep.subr.mxu0 0.0
  %171 = vmatpush2.msra.mxu0 0.0
  %172 = vmatprep.subr.mxu0 0.0
  %173 = vmatpush2.msra.mxu0 0.0
  %174 = vmatprep.subr.mxu0 0.0
  %175 = vmatpush2.msra.mxu0 0.0
  %176 = vmatprep.subr.mxu0 0.0
  %177 = vmatpush2.msra.mxu0 0.0
  %178 = vmatprep.subr.mxu0 0.0
  %179 = vmatpush2.msra.mxu0 0.0
  %180 = vmatprep.subr.mxu0 0.0
  %181 = vmatpush2.msra.mxu0 0.0
  %182 = vmatprep.subr.mxu0 0.0
  %183 = vmatpush2.msra.mxu0 0.0
  %184 = vmatprep.subr.mxu0 0.0
  %185 = vmatpush2.msra.mxu0 0.0
  %186 = vmatprep.subr.mxu0 0.0
  %187 = vmatpush2.msra.mxu0 0.0
  %188 = vmatprep.subr.mxu0 0.0
  %189 = vmatpush2.msra.mxu0 0.0
  %190 = vmatprep.subr.mxu0 0.0
  %191 = vmatpush2.msra.mxu0 0.0
  %192 = vmatprep.subr.mxu0 0.0
  %193 = vmatpush2.msra.mxu0 0.0
  %194 = vmatprep.subr.mxu0 0.0
  %195 = vmatpush2.msra.mxu0 0.0
  %196 = vmatprep.subr.mxu0 0.0
  %197 = vmatpush2.msra.mxu0 0.0
  %198 = vmatprep.subr.mxu0 0.0
  %199 = vmatpush2.msra.mxu0 0.0
  %200 = vmatprep.subr.mxu0 0.0
  %201 = vmatpush2.msra.mxu0 0.0
  %202 = vmatprep.mubr.f32.mxu0 0.0
  %203 = vmatmul.mubr.f32.gmra.mxu0 %v136
  %v204 = vpop.f32.mrf.mxu0
  %v205 = vadd.f32 %v131, %v204
  %v206 = vpop.f32.mrf.mxu0
  %v207 = vadd.f32 %v133, %v206
  %208 = vdwg.mxu0
  %v209 = vld [vmem:[%s4] sm:$0x3]
  %v211 = vlaneseq
  %v212 = vshrl.u32 %v211, 7
  %v213 = vsub.s32 0, %v212
  %v214 = vrot.slane %v209, %v213
  %v215 = vlaneseq
  %v216 = vshrl.u32 %v215, 7
  %v217 = vsub.s32 1, %v216
  %v218 = vrot.slane %v209, %v217
  %v221 = vadd.f32 %v205, %v214
  %v222 = vadd.f32 %v207, %v218
  %v223 = vxor.u32 %v221, 2147483648
  %v224 = vxor.u32 %v222, 2147483648
  %v225 = vmul.f32 %v223, 1.442695
  %v226 = vpow.pop %v225
  %v227 = vmul.f32 %v224, 1.442695
  %v228 = vpow.pop %v227
  %v229 = vadd.f32 %v226, 1.0
  %v230 = vadd.f32 %v228, 1.0
  %v231 = vrcp.pop %v229
  %v232 = vmul.f32 1.0, %v231
  %v233 = vrcp.pop %v230
  %v234 = vmul.f32 1.0, %v233
  %v235 = vmul.f32 %v221, %v232
  %v236 = vmul.f32 %v222, %v234
  %v237 = vld [vmem:[%s5] sm:$0xff]
  %v238 = vld [vmem:[%s5 + $0x8] sm:$0xff]
  %v239 = vld [vmem:[%s5 + $0x10] sm:$0xff]
  %v240 = vld [vmem:[%s5 + $0x18] sm:$0xff]
  %v241 = vld [vmem:[%s5 + $0x20] sm:$0xff]
  %v242 = vld [vmem:[%s5 + $0x28] sm:$0xff]
  %v243 = vld [vmem:[%s5 + $0x30] sm:$0xff]
  %v244 = vld [vmem:[%s5 + $0x38] sm:$0xff]
  %v245 = vld [vmem:[%s5 + $0x40] sm:$0xff]
  %v246 = vld [vmem:[%s5 + $0x48] sm:$0xff]
  %v247 = vld [vmem:[%s5 + $0x50] sm:$0xff]
  %v248 = vld [vmem:[%s5 + $0x58] sm:$0xff]
  %v249 = vld [vmem:[%s5 + $0x60] sm:$0xff]
  %v250 = vld [vmem:[%s5 + $0x68] sm:$0xff]
  %v251 = vld [vmem:[%s5 + $0x70] sm:$0xff]
  %v252 = vld [vmem:[%s5 + $0x78] sm:$0xff]
  %v253 = vld [vmem:[%s5 + $0x80] sm:$0xff]
  %v254 = vld [vmem:[%s5 + $0x88] sm:$0xff]
  %v255 = vld [vmem:[%s5 + $0x90] sm:$0xff]
  %v256 = vld [vmem:[%s5 + $0x98] sm:$0xff]
  %v257 = vld [vmem:[%s5 + $0xa0] sm:$0xff]
  %v258 = vld [vmem:[%s5 + $0xa8] sm:$0xff]
  %v259 = vld [vmem:[%s5 + $0xb0] sm:$0xff]
  %v260 = vld [vmem:[%s5 + $0xb8] sm:$0xff]
  %v261 = vld [vmem:[%s5 + $0xc0] sm:$0xff]
  %v262 = vld [vmem:[%s5 + $0xc8] sm:$0xff]
  %v263 = vld [vmem:[%s5 + $0xd0] sm:$0xff]
  %v264 = vld [vmem:[%s5 + $0xd8] sm:$0xff]
  %v265 = vld [vmem:[%s5 + $0xe0] sm:$0xff]
  %v266 = vld [vmem:[%s5 + $0xe8] sm:$0xff]
  %v267 = vld [vmem:[%s5 + $0xf0] sm:$0xff]
  %v268 = vld [vmem:[%s5 + $0xf8] sm:$0xff]
  %v269 = vld [vmem:[%s6] sm:$0x1]
  %v271 = vlaneseq
  %v272 = vshrl.u32 %v271, 7
  %v273 = vsub.s32 0, %v272
  %v274 = vrot.slane %v269, %v273
  %276 = vmatprep.subr.mxu0 0.0
  %277 = vmatpush1.msra.mxu0 %v252
  %278 = vmatprep.subr.mxu0 0.0
  %279 = vmatpush1.msra.mxu0 %v251
  %280 = vmatprep.subr.mxu0 0.0
  %281 = vmatpush1.msra.mxu0 %v250
  %282 = vmatprep.subr.mxu0 0.0
  %283 = vmatpush1.msra.mxu0 %v249
  %284 = vmatprep.subr.mxu0 0.0
  %285 = vmatpush1.msra.mxu0 %v248
  %286 = vmatprep.subr.mxu0 0.0
  %287 = vmatpush1.msra.mxu0 %v247
  %288 = vmatprep.subr.mxu0 0.0
  %289 = vmatpush1.msra.mxu0 %v246
  %290 = vmatprep.subr.mxu0 0.0
  %291 = vmatpush1.msra.mxu0 %v245
  %292 = vmatprep.subr.mxu0 0.0
  %293 = vmatpush1.msra.mxu0 %v244
  %294 = vmatprep.subr.mxu0 0.0
  %295 = vmatpush1.msra.mxu0 %v243
  %296 = vmatprep.subr.mxu0 0.0
  %297 = vmatpush1.msra.mxu0 %v242
  %298 = vmatprep.subr.mxu0 0.0
  %299 = vmatpush1.msra.mxu0 %v241
  %300 = vmatprep.subr.mxu0 0.0
  %301 = vmatpush1.msra.mxu0 %v240
  %302 = vmatprep.subr.mxu0 0.0
  %303 = vmatpush1.msra.mxu0 %v239
  %304 = vmatprep.subr.mxu0 0.0
  %305 = vmatpush1.msra.mxu0 %v238
  %306 = vmatprep.subr.mxu0 0.0
  %307 = vmatpush1.msra.mxu0 %v237
  %308 = vmatprep.subr.mxu0 0.0
  %309 = vmatpush2.msra.mxu0 %v268
  %310 = vmatprep.subr.mxu0 0.0
  %311 = vmatpush2.msra.mxu0 %v267
  %312 = vmatprep.subr.mxu0 0.0
  %313 = vmatpush2.msra.mxu0 %v266
  %314 = vmatprep.subr.mxu0 0.0
  %315 = vmatpush2.msra.mxu0 %v265
  %316 = vmatprep.subr.mxu0 0.0
  %317 = vmatpush2.msra.mxu0 %v264
  %318 = vmatprep.subr.mxu0 0.0
  %319 = vmatpush2.msra.mxu0 %v263
  %320 = vmatprep.subr.mxu0 0.0
  %321 = vmatpush2.msra.mxu0 %v262
  %322 = vmatprep.subr.mxu0 0.0
  %323 = vmatpush2.msra.mxu0 %v261
  %324 = vmatprep.subr.mxu0 0.0
  %325 = vmatpush2.msra.mxu0 %v260
  %326 = vmatprep.subr.mxu0 0.0
  %327 = vmatpush2.msra.mxu0 %v259
  %328 = vmatprep.subr.mxu0 0.0
  %329 = vmatpush2.msra.mxu0 %v258
  %330 = vmatprep.subr.mxu0 0.0
  %331 = vmatpush2.msra.mxu0 %v257
  %332 = vmatprep.subr.mxu0 0.0
  %333 = vmatpush2.msra.mxu0 %v256
  %334 = vmatprep.subr.mxu0 0.0
  %335 = vmatpush2.msra.mxu0 %v255
  %336 = vmatprep.subr.mxu0 0.0
  %337 = vmatpush2.msra.mxu0 %v254
  %338 = vmatprep.subr.mxu0 0.0
  %339 = vmatpush2.msra.mxu0 %v253
  %340 = vmatprep.mubr.f32.mxu0 %v236
  %341 = vmatmul.mubr.f32.gmra.mxu0 %v235
  %v342 = vpop.f32.mrf.mxu0
  %v343 = vadd.f32 %v274, %v342
  %v344 = vpop.f32.mrf.mxu0
  %345 = vdwg.mxu0
  %346 = vst [vmem:[%s7] sm:$0xf] %v343
  // Predicated region
  $region30: #{causal_decoder_forward.1} parent=0 // pred_check
    _
  $region31: #{causal_decoder_forward.1} parent=0 // pred_check_branch
    %348 = sbr.rel (0) target = $region33
  $region32: #{causal_decoder_forward.1} parent=0 // pred_region
    _
  $region33: #{causal_decoder_forward.1} parent=0 // pred_fallthru
    _
  // Predicated region
  $region34: #{causal_decoder_forward.1} parent=0 // pred_check
    _
  $region35: #{causal_decoder_forward.1} parent=0 // pred_check_branch
    %350 = sbr.rel (0) target = $region37
  $region36: #{causal_decoder_forward.1} parent=0 // pred_region
    _
  $region37: #{causal_decoder_forward.1} parent=0 // pred_fallthru
    _

</llo_original>
